<compile_context>
chip_gen: v6e
topology: v6e:2x2x1
jax: 0.10.0
libtpu: 0.0.40
codegen_flags: <defaults>
</compile_context>

<pallas_src>
import jax
import jax.numpy as jnp
from jax.experimental import pallas as pl
from jax.experimental.pallas import tpu as pltpu


# Maximum number of row-gather DMAs kept in flight per grid step.
_DMA_DEPTH = 16


def _embed_kernel(ids_ref, table_ref, out_ref, row_buf, sem):
    """Gather `tok_block` embedding rows from the HBM table into one output tile.

    ids_ref:   (n_padded,) int32 in SMEM (scalar prefetch) — flat token ids.
    table_ref: (V, D) raw HBM ref (memory_space=pl.ANY).
    out_ref:   (tok_block, D) pipelined VMEM output block.
    row_buf:   (tok_block, D) VMEM scratch the row DMAs land in.
    sem:       (_DMA_DEPTH,) DMA semaphores.
    """
    tok_block, _ = out_ref.shape
    depth = min(_DMA_DEPTH, tok_block)      # python ints -> static
    base = pl.program_id(0) * tok_block     # first token of this block

    def row_copy(j):
        tok = ids_ref[base + j]             # scalar read from SMEM
        return pltpu.make_async_copy(
            table_ref.at[pl.ds(tok, 1), :],   # one (1, D) row in HBM
            row_buf.at[pl.ds(j, 1), :],       # its slot in the VMEM tile
            sem.at[j % depth],
        )

    # Prime: put `depth` row fetches in flight.
    @pl.loop(0, depth)
    def _prime(j):
        row_copy(j).start()

    # Steady state: retire row j, immediately launch row j + depth
    # (keeps exactly `depth` outstanding DMAs, one per semaphore).
    @pl.loop(0, tok_block - depth)
    def _steady(j):
        row_copy(j).wait()
        row_copy(j + depth).start()

    # Drain the tail.
    @pl.loop(tok_block - depth, tok_block)
    def _drain(j):
        row_copy(j).wait()

    # Lane/sublane-dense store of the whole (tok_block, D) tile.
    out_ref[...] = row_buf[...]


def _round_up(x: int, m: int) -> int:
    return ((x + m - 1) // m) * m


def t5_embeddings(input_ids: jax.Array, embedding_table: jax.Array,
                  *, tok_block: int = 128) -> jax.Array:
    """Pallas equivalent of T5Embeddings.forward: shared(input_ids).

    input_ids:        [B, S] integer token ids
    embedding_table:  [vocab_size, d_model] float
    returns:          [B, S, d_model]
    """
    B, S = input_ids.shape
    V, D = embedding_table.shape
    n_tokens = B * S

    # Tokens processed per grid step (multiple of 8 for sublane-dense tiles).
    tok_block = min(tok_block, _round_up(n_tokens, 8))
    n_padded = _round_up(n_tokens, tok_block)

    flat_ids = input_ids.reshape(n_tokens).astype(jnp.int32)
    if n_padded != n_tokens:
        pad = jnp.zeros((n_padded - n_tokens,), jnp.int32)  # pad ids gather row 0
        flat_ids = jnp.concatenate([flat_ids, pad])

    out_flat = pl.pallas_call(
        _embed_kernel,
        out_shape=jax.ShapeDtypeStruct((n_padded, D), embedding_table.dtype),
        grid_spec=pltpu.PrefetchScalarGridSpec(
            num_scalar_prefetch=1,                  # flat_ids -> SMEM
            grid=(n_padded // tok_block,),
            in_specs=[
                # Embedding table stays in HBM; rows are gathered manually.
                pl.BlockSpec(memory_space=pl.ANY),
            ],
            out_specs=pl.BlockSpec((tok_block, D), lambda i, ids: (i, 0)),
            scratch_shapes=[
                pltpu.VMEM((tok_block, D), embedding_table.dtype),
                pltpu.SemaphoreType.DMA((_DMA_DEPTH,)),
            ],
        ),
        compiler_params=pltpu.CompilerParams(
            # Independent output tiles -> shard across TensorCores on v7x.
            dimension_semantics=("parallel",),
        ),
    )(flat_ids, embedding_table)

    return out_flat[:n_tokens].reshape(B, S, D)


if __name__ == "__main__":
    # Config (small, consistent with T5Embeddings __init__ shapes).
    vocab_size = 64
    d_model = 128
    batch, seq = 2, 8

    key = jax.random.PRNGKey(0)
    k_emb, k_ids, k_ids2 = jax.random.split(key, 3)

    # nn.Embedding weight init: normal(mean=0, std=factor*1.0), factor=1.0
    shared_weight = jax.random.normal(k_emb, (vocab_size, d_model), dtype=jnp.float32)

    # --- primary check: B=2, S=8 (single token block) ---
    input_ids = jax.random.randint(k_ids, (batch, seq), 0, vocab_size, dtype=jnp.int32)
    out = t5_embeddings(input_ids, shared_weight)
    out = jax.block_until_ready(out)

    ref = jnp.take(shared_weight, input_ids, axis=0)
    assert out.shape == (batch, seq, d_model), out.shape
    assert out.dtype == jnp.float32, out.dtype
    assert jnp.allclose(out, ref), "mismatch vs reference embedding lookup"

    # --- secondary check: multiple token blocks + padding path ---
    seq2 = 21  # 2*21 = 42 tokens -> padded to 48 with tok_block=16 (3 grid steps)
    input_ids2 = jax.random.randint(k_ids2, (batch, seq2), 0, vocab_size, dtype=jnp.int32)
    out2 = t5_embeddings(input_ids2, shared_weight, tok_block=16)
    out2 = jax.block_until_ready(out2)

    ref2 = jnp.take(shared_weight, input_ids2, axis=0)
    assert out2.shape == (batch, seq2, d_model), out2.shape
    assert jnp.allclose(out2, ref2), "mismatch vs reference (multi-block path)"

    print("KERNEL_OK")
</pallas_src>

<mosaic_0001>
module attributes {stable_mosaic.version = 11 : i64} {
  func.func @_embed_kernel(%arg0: i32, %arg1: memref<16xi32, #tpu.memory_space<smem>>, %arg2: memref<64x128xf32, #tpu.memory_space<any>>, %arg3: memref<16x128xf32, #tpu.memory_space<vmem>>, %arg4: memref<16x128xf32, #tpu.memory_space<vmem>>, %arg5: memref<16x!tpu.dma_semaphore, #tpu.memory_space<semaphore_mem>>) attributes {dimension_semantics = [#tpu.dimension_semantics<parallel>], iteration_bounds = array<i64: 1>, scalar_prefetch = 1 : i64, scratch_operands = 2 : i64, tpu.core_type = #tpu.core_type<tc>, window_params = [{}, {transform_indices = @transform_1, window_bounds = array<i64: 16, 128>}]} {
    %c16_i32 = arith.constant 16 : i32
    %0 = arith.muli %arg0, %c16_i32 : i32
    %c0_i32 = arith.constant 0 : i32
    %c16_i32_0 = arith.constant 16 : i32
    %1 = arith.addi %c0_i32, %c16_i32_0 : i32
    %c1_i32 = arith.constant 1 : i32
    scf.for %arg6 = %c0_i32 to %1 step %c1_i32  : i32 {
      %c1_i32_13 = arith.constant 1 : i32
      %6 = arith.muli %arg6, %c1_i32_13 : i32
      %c0_i32_14 = arith.constant 0 : i32
      %7 = arith.addi %c0_i32_14, %6 : i32
      %8 = arith.addi %0, %7 : i32
      %9 = arith.index_cast %8 : i32 to index
      %10 = memref.load %arg1[%9] : memref<16xi32, #tpu.memory_space<smem>>
      %c16_i32_15 = arith.constant 16 : i32
      %c0_i32_16 = arith.constant 0 : i32
      %11 = arith.cmpi eq, %c16_i32_15, %c0_i32_16 : i32
      %c1_i32_17 = arith.constant 1 : i32
      %12 = arith.select %11, %c1_i32_17, %c16_i32_15 : i32
      %13 = arith.remsi %7, %12 : i32
      %c0_i32_18 = arith.constant 0 : i32
      %14 = arith.cmpi ne, %13, %c0_i32_18 : i32
      %c0_i32_19 = arith.constant 0 : i32
      %15 = arith.cmpi slt, %13, %c0_i32_19 : i32
      %c0_i32_20 = arith.constant 0 : i32
      %16 = arith.cmpi slt, %12, %c0_i32_20 : i32
      %17 = arith.xori %15, %16 : i1
      %18 = arith.andi %17, %14 : i1
      %19 = arith.addi %13, %12 : i32
      %20 = arith.select %18, %19, %13 : i32
      %c0_i32_21 = arith.constant 0 : i32
      %21 = tpu.memref_slice %arg2[%10, %c0_i32_21] : memref<64x128xf32, #tpu.memory_space<any>> -> memref<1x128xf32, #tpu.memory_space<any>>
      %c0_i32_22 = arith.constant 0 : i32
      %22 = tpu.memref_slice %arg4[%7, %c0_i32_22] : memref<16x128xf32, #tpu.memory_space<vmem>> -> memref<1x128xf32, #tpu.memory_space<vmem>>
      %23 = tpu.memref_slice %arg5[%20] : memref<16x!tpu.dma_semaphore, #tpu.memory_space<semaphore_mem>> -> memref<1x!tpu.dma_semaphore, #tpu.memory_space<semaphore_mem>>
      %24 = tpu.memref_squeeze %23 : memref<1x!tpu.dma_semaphore, #tpu.memory_space<semaphore_mem>> -> memref<!tpu.dma_semaphore, #tpu.memory_space<semaphore_mem>>
      tpu.enqueue_dma source(%21 : memref<1x128xf32, #tpu.memory_space<any>>) target(%22 : memref<1x128xf32, #tpu.memory_space<vmem>>) target_semaphore(%24 : memref<!tpu.dma_semaphore, #tpu.memory_space<semaphore_mem>>)
    }
    %c16_i32_1 = arith.constant 16 : i32
    %c0_i32_2 = arith.constant 0 : i32
    %c0_i32_3 = arith.constant 0 : i32
    %2 = arith.addi %c0_i32_2, %c0_i32_3 : i32
    %c1_i32_4 = arith.constant 1 : i32
    scf.for %arg6 = %c0_i32_2 to %2 step %c1_i32_4  : i32 {
      %c1_i32_13 = arith.constant 1 : i32
      %6 = arith.muli %arg6, %c1_i32_13 : i32
      %c0_i32_14 = arith.constant 0 : i32
      %7 = arith.addi %c0_i32_14, %6 : i32
      %8 = arith.addi %0, %7 : i32
      %9 = arith.index_cast %8 : i32 to index
      %10 = memref.load %arg1[%9] : memref<16xi32, #tpu.memory_space<smem>>
      %c16_i32_15 = arith.constant 16 : i32
      %c0_i32_16 = arith.constant 0 : i32
      %11 = arith.cmpi eq, %c16_i32_15, %c0_i32_16 : i32
      %c1_i32_17 = arith.constant 1 : i32
      %12 = arith.select %11, %c1_i32_17, %c16_i32_15 : i32
      %13 = arith.remsi %7, %12 : i32
      %c0_i32_18 = arith.constant 0 : i32
      %14 = arith.cmpi ne, %13, %c0_i32_18 : i32
      %c0_i32_19 = arith.constant 0 : i32
      %15 = arith.cmpi slt, %13, %c0_i32_19 : i32
      %c0_i32_20 = arith.constant 0 : i32
      %16 = arith.cmpi slt, %12, %c0_i32_20 : i32
      %17 = arith.xori %15, %16 : i1
      %18 = arith.andi %17, %14 : i1
      %19 = arith.addi %13, %12 : i32
      %20 = arith.select %18, %19, %13 : i32
      %c0_i32_21 = arith.constant 0 : i32
      %21 = tpu.memref_slice %arg2[%10, %c0_i32_21] : memref<64x128xf32, #tpu.memory_space<any>> -> memref<1x128xf32, #tpu.memory_space<any>>
      %c0_i32_22 = arith.constant 0 : i32
      %22 = tpu.memref_slice %arg4[%7, %c0_i32_22] : memref<16x128xf32, #tpu.memory_space<vmem>> -> memref<1x128xf32, #tpu.memory_space<vmem>>
      %23 = tpu.memref_slice %arg5[%20] : memref<16x!tpu.dma_semaphore, #tpu.memory_space<semaphore_mem>> -> memref<1x!tpu.dma_semaphore, #tpu.memory_space<semaphore_mem>>
      %24 = tpu.memref_squeeze %23 : memref<1x!tpu.dma_semaphore, #tpu.memory_space<semaphore_mem>> -> memref<!tpu.dma_semaphore, #tpu.memory_space<semaphore_mem>>
      tpu.wait_dma2 semaphore(%24 : memref<!tpu.dma_semaphore, #tpu.memory_space<semaphore_mem>>) src(%21 : memref<1x128xf32, #tpu.memory_space<any>>) dst(%22 : memref<1x128xf32, #tpu.memory_space<vmem>>)
      %c16_i32_23 = arith.constant 16 : i32
      %25 = arith.addi %7, %c16_i32_23 : i32
      %26 = arith.addi %0, %25 : i32
      %27 = arith.index_cast %26 : i32 to index
      %28 = memref.load %arg1[%27] : memref<16xi32, #tpu.memory_space<smem>>
      %c16_i32_24 = arith.constant 16 : i32
      %c0_i32_25 = arith.constant 0 : i32
      %29 = arith.cmpi eq, %c16_i32_24, %c0_i32_25 : i32
      %c1_i32_26 = arith.constant 1 : i32
      %30 = arith.select %29, %c1_i32_26, %c16_i32_24 : i32
      %31 = arith.remsi %25, %30 : i32
      %c0_i32_27 = arith.constant 0 : i32
      %32 = arith.cmpi ne, %31, %c0_i32_27 : i32
      %c0_i32_28 = arith.constant 0 : i32
      %33 = arith.cmpi slt, %31, %c0_i32_28 : i32
      %c0_i32_29 = arith.constant 0 : i32
      %34 = arith.cmpi slt, %30, %c0_i32_29 : i32
      %35 = arith.xori %33, %34 : i1
      %36 = arith.andi %35, %32 : i1
      %37 = arith.addi %31, %30 : i32
      %38 = arith.select %36, %37, %31 : i32
      %c0_i32_30 = arith.constant 0 : i32
      %39 = tpu.memref_slice %arg2[%28, %c0_i32_30] : memref<64x128xf32, #tpu.memory_space<any>> -> memref<1x128xf32, #tpu.memory_space<any>>
      %c0_i32_31 = arith.constant 0 : i32
      %40 = tpu.memref_slice %arg4[%25, %c0_i32_31] : memref<16x128xf32, #tpu.memory_space<vmem>> -> memref<1x128xf32, #tpu.memory_space<vmem>>
      %41 = tpu.memref_slice %arg5[%38] : memref<16x!tpu.dma_semaphore, #tpu.memory_space<semaphore_mem>> -> memref<1x!tpu.dma_semaphore, #tpu.memory_space<semaphore_mem>>
      %42 = tpu.memref_squeeze %41 : memref<1x!tpu.dma_semaphore, #tpu.memory_space<semaphore_mem>> -> memref<!tpu.dma_semaphore, #tpu.memory_space<semaphore_mem>>
      tpu.enqueue_dma source(%39 : memref<1x128xf32, #tpu.memory_space<any>>) target(%40 : memref<1x128xf32, #tpu.memory_space<vmem>>) target_semaphore(%42 : memref<!tpu.dma_semaphore, #tpu.memory_space<semaphore_mem>>)
    }
    %c0_i32_5 = arith.constant 0 : i32
    %c0_i32_6 = arith.constant 0 : i32
    %c16_i32_7 = arith.constant 16 : i32
    %3 = arith.addi %c0_i32_6, %c16_i32_7 : i32
    %c1_i32_8 = arith.constant 1 : i32
    scf.for %arg6 = %c0_i32_6 to %3 step %c1_i32_8  : i32 {
      %c1_i32_13 = arith.constant 1 : i32
      %6 = arith.muli %arg6, %c1_i32_13 : i32
      %c0_i32_14 = arith.constant 0 : i32
      %7 = arith.addi %c0_i32_14, %6 : i32
      %8 = arith.addi %0, %7 : i32
      %9 = arith.index_cast %8 : i32 to index
      %10 = memref.load %arg1[%9] : memref<16xi32, #tpu.memory_space<smem>>
      %c16_i32_15 = arith.constant 16 : i32
      %c0_i32_16 = arith.constant 0 : i32
      %11 = arith.cmpi eq, %c16_i32_15, %c0_i32_16 : i32
      %c1_i32_17 = arith.constant 1 : i32
      %12 = arith.select %11, %c1_i32_17, %c16_i32_15 : i32
      %13 = arith.remsi %7, %12 : i32
      %c0_i32_18 = arith.constant 0 : i32
      %14 = arith.cmpi ne, %13, %c0_i32_18 : i32
      %c0_i32_19 = arith.constant 0 : i32
      %15 = arith.cmpi slt, %13, %c0_i32_19 : i32
      %c0_i32_20 = arith.constant 0 : i32
      %16 = arith.cmpi slt, %12, %c0_i32_20 : i32
      %17 = arith.xori %15, %16 : i1
      %18 = arith.andi %17, %14 : i1
      %19 = arith.addi %13, %12 : i32
      %20 = arith.select %18, %19, %13 : i32
      %c0_i32_21 = arith.constant 0 : i32
      %21 = tpu.memref_slice %arg2[%10, %c0_i32_21] : memref<64x128xf32, #tpu.memory_space<any>> -> memref<1x128xf32, #tpu.memory_space<any>>
      %c0_i32_22 = arith.constant 0 : i32
      %22 = tpu.memref_slice %arg4[%7, %c0_i32_22] : memref<16x128xf32, #tpu.memory_space<vmem>> -> memref<1x128xf32, #tpu.memory_space<vmem>>
      %23 = tpu.memref_slice %arg5[%20] : memref<16x!tpu.dma_semaphore, #tpu.memory_space<semaphore_mem>> -> memref<1x!tpu.dma_semaphore, #tpu.memory_space<semaphore_mem>>
      %24 = tpu.memref_squeeze %23 : memref<1x!tpu.dma_semaphore, #tpu.memory_space<semaphore_mem>> -> memref<!tpu.dma_semaphore, #tpu.memory_space<semaphore_mem>>
      tpu.wait_dma2 semaphore(%24 : memref<!tpu.dma_semaphore, #tpu.memory_space<semaphore_mem>>) src(%21 : memref<1x128xf32, #tpu.memory_space<any>>) dst(%22 : memref<1x128xf32, #tpu.memory_space<vmem>>)
    }
    %c16_i32_9 = arith.constant 16 : i32
    %c0 = arith.constant 0 : index
    %c0_10 = arith.constant 0 : index
    %4 = vector.load %arg4[%c0, %c0_10] : memref<16x128xf32, #tpu.memory_space<vmem>>, vector<16x128xf32>
    %c0_11 = arith.constant 0 : index
    %c0_12 = arith.constant 0 : index
    %5 = vector.load %arg3[%c0_11, %c0_12] : memref<16x128xf32, #tpu.memory_space<vmem>>, vector<16x128xf32>
    tpu.vector_store %arg3[%c0_11, %c0_12], %4 {strides = array<i32>} : memref<16x128xf32, #tpu.memory_space<vmem>>, vector<16x128xf32>,
    return
  }
  func.func @transform_1(%arg0: i32, %arg1: memref<16xi32, #tpu.memory_space<smem>>) -> (i32, i32) {
    %c0_i32 = arith.constant 0 : i32
    %c0_i32_0 = arith.constant 0 : i32
    return %arg0, %c0_i32 : i32, i32
  }
}

</mosaic_0001>

<llo_original>
// kernel: tpu_custom_call.1
$region0: #{tpu_custom_call.1}
  #allocation0 [shape = 'u32[]', space=smem, size = 0x4, offset = 0x4, fixed_abs, tag = 'smem constant byte address 0x4 - core index']
  #allocation1 [shape = 'u32[144,128]{1,0:T(1,128)}', space=vmem, size = 0x12000, scoped, tag = 'internal scratch']
  #allocation2 [shape = 'f32[16,128]{1,0:T(8,128)}', space=vmem, size = 0x2000, scoped, tag = 'scratch operand']
  #allocation3 [shape = 's32[16]{0}', space=sflag, size = 0x40, scoped, tag = 'scratch operand']
  #allocation4 [shape = 's32[1]{0}', space=sflag, size = 0x4, scoped, tag = 'scoped memory for tpu_custom_call.1']
  #allocation5 [shape = 'u8[512]{0}', space=smem, size = 0x200, scoped, tag = 'prefetched SMEM operand 0']
  #allocation8 [shape = 's32[]', space=sflag, size = 0x4, offset = 0, fixed_abs, tag = 'sflag constant byte address 0x0 - dummy sync flag']
  #allocation9 [shape = 's32[]', space=sflag, size = 0x4, offset = 0, fixed_abs, tag = 'sflag constant byte address 0x0 - dummy sync flag']
  #allocation10 [shape = 'u32[]', space=smem, size = 0x4, offset = 0x44, fixed_abs, tag = 'smem constant byte address 0x44 - assertion arg 0']
  #allocation11 [shape = 'u32[]', space=smem, size = 0x4, offset = 0x48, fixed_abs, tag = 'smem constant byte address 0x48 - assertion arg 1']
  %s0 = inlined_call_operand.hbm [shape: s32[16], index: 0, kind: input, shape index: {}]
  %s1 = inlined_call_operand.hbm [shape: f32[64,128], index: 1, kind: input, shape index: {}]
  %s2 = inlined_call_operand.hbm [shape: f32[16,128], index: 2, kind: output, shape index: {}]
  %s3 = sld [smem:[#allocation0]]
  $region28: #{tpu_custom_call.1} parent=0
    _
  %s5 = ssub.s32 1, %s3
  %s6 = scalar_select 0, %s5, %s3
  %8 = dma.hbm_to_smem %s0, 16, [#allocation5], [#allocation4]
  %9 = dma.done [#allocation4], 16
  %10 = sfence
  $region1: #{tpu_custom_call.1} parent=0
    #allocation6 [shape = 'u8[8192]{0}', space=vmem, size = 0x2000, scoped, tag = 'output window, operand 0, single buffered']
    #allocation7 [shape = 's32[1]{0}', space=sflag, size = 0x4, scoped, tag = 'scoped memory for tpu_custom_call.1']
    %11 = vsyncpa [#allocation7], 0
    %s12 = smul.u32 0, 16
    loop: start=0, step=1, limit=16
    $region2: #{tpu_custom_call.1} parent=1 // loop_pre_header
      _
    $region3: #{tpu_custom_call.1} parent=1 // loop_header
      %s14 = sphi 0, %s18
      %p15 = scmp.ge.s32.totalorder %s14, 16
    $region4: #{tpu_custom_call.1} parent=1 // loop_header_branch
      %17 = sbr.rel (%p15) target = $region8
    $region5: #{tpu_custom_call.1} parent=1 // loop_body
      %s19 = sadd.s32 %s12, %s14
      %s20 = sld [smem:[#allocation5 + %s19]]
      %p21 = scmp.lt.s32.totalorder %s14, 0
      %s22 = ssub.s32 0, %s14
      %s23 = scalar_select %p21, %s22, %s14
      %s24 = sand.u32 %s23, 15
      %s25 = ssub.s32 0, %s24
      %s26 = scalar_select %p21, %s25, %s24
      %p27 = scmp.ne.s32.totalorder %s26, 0
      %p28 = scmp.lt.s32.totalorder %s26, 0
      %p29 = pnand %p28, %p27
      %p30 = pneg %p29
      %s31 = sadd.s32 %s26, 16
      %s32 = scalar_select %p30, %s31, %s26
      %s33 = smul.addr %s20, 16
      %s34 = scalar_lea.hbm %s1, %s33
      %s35 = scalar_lea.vmem [#allocation2], %s14
      %s36 = scalar_lea.sflag [#allocation3], %s32
      // Predicated region
      $region9: #{tpu_custom_call.1} parent=5 // pred_check
        _
      $region10: #{tpu_custom_call.1} parent=5 // pred_check_branch
        %38 = sbr.rel target = $region12
      $region11: #{tpu_custom_call.1} parent=5 // pred_region
        %39 = sst [smem:[#allocation10]] [#allocation9]
        %40 = sst [smem:[#allocation11]] [#allocation8]
      $region12: #{tpu_custom_call.1} parent=5 // pred_fallthru
        _
      %42 = shalt.err (0)
      %s44 = sshll.u32 %s35, 4
      %s45 = int_to_ptr.vmem [resolvable:$true] %s44
      %47 = dma.hbm_to_vmem [thread:$0]  %s34, 16, %s45, %s36
    $region6: #{tpu_custom_call.1} parent=1 // loop_footer
      %s18 = sadd.s32 1, %s14
    $region7: #{tpu_custom_call.1} parent=1 // loop_footer_branch
      %13 = sbr.rel target = $region3
    $region8: #{tpu_custom_call.1} parent=1 // loop_exit
      _
    loop: start=0, step=1, limit=16
    $region13: #{tpu_custom_call.1} parent=1 // loop_pre_header
      _
    $region14: #{tpu_custom_call.1} parent=1 // loop_header
      %s49 = sphi 0, %s53
      %p50 = scmp.ge.s32.totalorder %s49, 16
    $region15: #{tpu_custom_call.1} parent=1 // loop_header_branch
      %52 = sbr.rel (%p50) target = $region19
    $region16: #{tpu_custom_call.1} parent=1 // loop_body
      %s54 = sadd.s32 %s12, %s49
      %s55 = sld [smem:[#allocation5 + %s54]]
      %p56 = scmp.lt.s32.totalorder %s49, 0
      %s57 = ssub.s32 0, %s49
      %s58 = scalar_select %p56, %s57, %s49
      %s59 = sand.u32 %s58, 15
      %s60 = ssub.s32 0, %s59
      %s61 = scalar_select %p56, %s60, %s59
      %p62 = scmp.ne.s32.totalorder %s61, 0
      %p63 = scmp.lt.s32.totalorder %s61, 0
      %p64 = pnand %p63, %p62
      %p65 = pneg %p64
      %s66 = sadd.s32 %s61, 16
      %s67 = scalar_select %p65, %s66, %s61
      %s68 = scalar_lea.sflag [#allocation3], %s67
      %s69 = smul.u32 1, 1
      %s70 = sshll.u32 %s69, 4
      %71 = dma.done %s68, %s70
    $region17: #{tpu_custom_call.1} parent=1 // loop_footer
      %s53 = sadd.s32 1, %s49
    $region18: #{tpu_custom_call.1} parent=1 // loop_footer_branch
      %48 = sbr.rel target = $region14
    $region19: #{tpu_custom_call.1} parent=1 // loop_exit
      _
    %v72 = vld [vmem:[#allocation2] sm:$0xff]
    %v73 = vld [vmem:[#allocation2 + $0x8] sm:$0xff]
    %74 = vst [vmem:[#allocation6] sm:$0xff] %v72
    %75 = vst [vmem:[#allocation6 + $0x8] sm:$0xff] %v73
    // Predicated region
    $region20: #{tpu_custom_call.1} parent=1 // pred_check
      _
    $region21: #{tpu_custom_call.1} parent=1 // pred_check_branch
      %77 = sbr.rel (0) target = $region23
    $region22: #{tpu_custom_call.1} parent=1 // pred_region
      %s79 = ssub.s32 256, 256
      %80 = vsyncadd [#allocation7], %s79
      %s81 = sshll.u32 [#allocation6], 4
      %s82 = int_to_ptr.vmem [resolvable:$true] %s81
      %87 = dma.vmem_to_hbm [thread:$0]  %s82, 256, %s2, [#allocation7], 128, 128, 8
    $region23: #{tpu_custom_call.1} parent=1 // pred_fallthru
      _
    // Predicated region
    $region24: #{tpu_custom_call.1} parent=1 // pred_check
      _
    $region25: #{tpu_custom_call.1} parent=1 // pred_check_branch
      %89 = sbr.rel (0) target = $region27
    $region26: #{tpu_custom_call.1} parent=1 // pred_region
      %90 = dma.done [#allocation7], 256
    $region27: #{tpu_custom_call.1} parent=1 // pred_fallthru
      _
    %91 = vsyncpa [#allocation7], 1
  %92 = vsyncmov [#allocation3]
  %s93 = vpop.sfrf %92
  %p94 = scmp.eq.s32.totalorder %s93, 0
  %p95 = pneg %p94
  %97 = shalt.err (%p95)
  %s98 = scalar_lea.sflag [#allocation3], 1
  %99 = vsyncmov %s98
  %s100 = vpop.sfrf %99
  %p101 = scmp.eq.s32.totalorder %s100, 0
  %p102 = pneg %p101
  %104 = shalt.err (%p102)
  %s105 = scalar_lea.sflag [#allocation3], 2
  %106 = vsyncmov %s105
  %s107 = vpop.sfrf %106
  %p108 = scmp.eq.s32.totalorder %s107, 0
  %p109 = pneg %p108
  %111 = shalt.err (%p109)
  %s112 = scalar_lea.sflag [#allocation3], 3
  %113 = vsyncmov %s112
  %s114 = vpop.sfrf %113
  %p115 = scmp.eq.s32.totalorder %s114, 0
  %p116 = pneg %p115
  %118 = shalt.err (%p116)
  %s119 = scalar_lea.sflag [#allocation3], 4
  %120 = vsyncmov %s119
  %s121 = vpop.sfrf %120
  %p122 = scmp.eq.s32.totalorder %s121, 0
  %p123 = pneg %p122
  %125 = shalt.err (%p123)
  %s126 = scalar_lea.sflag [#allocation3], 5
  %127 = vsyncmov %s126
  %s128 = vpop.sfrf %127
  %p129 = scmp.eq.s32.totalorder %s128, 0
  %p130 = pneg %p129
  %132 = shalt.err (%p130)
  %s133 = scalar_lea.sflag [#allocation3], 6
  %134 = vsyncmov %s133
  %s135 = vpop.sfrf %134
  %p136 = scmp.eq.s32.totalorder %s135, 0
  %p137 = pneg %p136
  %139 = shalt.err (%p137)
  %s140 = scalar_lea.sflag [#allocation3], 7
  %141 = vsyncmov %s140
  %s142 = vpop.sfrf %141
  %p143 = scmp.eq.s32.totalorder %s142, 0
  %p144 = pneg %p143
  %146 = shalt.err (%p144)
  %s147 = scalar_lea.sflag [#allocation3], 8
  %148 = vsyncmov %s147
  %s149 = vpop.sfrf %148
  %p150 = scmp.eq.s32.totalorder %s149, 0
  %p151 = pneg %p150
  %153 = shalt.err (%p151)
  %s154 = scalar_lea.sflag [#allocation3], 9
  %155 = vsyncmov %s154
  %s156 = vpop.sfrf %155
  %p157 = scmp.eq.s32.totalorder %s156, 0
  %p158 = pneg %p157
  %160 = shalt.err (%p158)
  %s161 = scalar_lea.sflag [#allocation3], 10
  %162 = vsyncmov %s161
  %s163 = vpop.sfrf %162
  %p164 = scmp.eq.s32.totalorder %s163, 0
  %p165 = pneg %p164
  %167 = shalt.err (%p165)
  %s168 = scalar_lea.sflag [#allocation3], 11
  %169 = vsyncmov %s168
  %s170 = vpop.sfrf %169
  %p171 = scmp.eq.s32.totalorder %s170, 0
  %p172 = pneg %p171
  %174 = shalt.err (%p172)
  %s175 = scalar_lea.sflag [#allocation3], 12
  %176 = vsyncmov %s175
  %s177 = vpop.sfrf %176
  %p178 = scmp.eq.s32.totalorder %s177, 0
  %p179 = pneg %p178
  %181 = shalt.err (%p179)
  %s182 = scalar_lea.sflag [#allocation3], 13
  %183 = vsyncmov %s182
  %s184 = vpop.sfrf %183
  %p185 = scmp.eq.s32.totalorder %s184, 0
  %p186 = pneg %p185
  %188 = shalt.err (%p186)
  %s189 = scalar_lea.sflag [#allocation3], 14
  %190 = vsyncmov %s189
  %s191 = vpop.sfrf %190
  %p192 = scmp.eq.s32.totalorder %s191, 0
  %p193 = pneg %p192
  %195 = shalt.err (%p193)
  %s196 = scalar_lea.sflag [#allocation3], 15
  %197 = vsyncmov %s196
  %s198 = vpop.sfrf %197
  %p199 = scmp.eq.s32.totalorder %s198, 0
  %p200 = pneg %p199
  %202 = shalt.err (%p200)

</llo_original>
